<compile_context>
chip_gen: v7x
topology: tpu7x:2x2x1
jax: 0.10.0
libtpu: 0.0.40
codegen_flags: <defaults>
</compile_context>

<pallas_src>
import jax
import jax.numpy as jnp
from jax import lax
from jax.experimental import pallas as pl
from jax.experimental.pallas import tpu as pltpu


def _make_kernel(t_total, needs_mask, split):
    """Build the kernel with static config baked in via closure."""

    def kernel(xproj_ref, w1_ref, wout_ref, bout_ref, out_ref, h_ref):
        # xproj_ref: [tT, b_tile, H]  time-major tile of (x @ V1^T + b1)
        # w1_ref:    [H, H]           W1.weight^T (compute dtype)
        # wout_ref:  [H, O_pad]       Wout.weight^T, lane-padded with zeros (f32)
        # bout_ref:  [1, O_pad]       Wout.bias, padded lanes = -1e30 (softmax mask)
        # out_ref:   [b_tile, O_pad]  softmax probabilities (padded lanes -> 0)
        # h_ref:     [b_tile, H]      f32 hidden-state carry across time blocks
        t_idx = pl.program_id(1)
        n_t = pl.num_programs(1)
        tT = xproj_ref.shape[0]
        b_tile = h_ref.shape[0]

        # Reset hidden state at the start of each batch tile's time sweep.
        @pl.when(t_idx == 0)
        def _init():
            h_ref[...] = jnp.zeros_like(h_ref)

        # Hoist the recurrent weight load out of the serial loop.
        w1 = w1_ref[...]
        cdt = w1.dtype
        t_base = t_idx * tT

        def guard(t, new, old):
            # Identity on padded (out-of-range) timesteps.
            if not needs_mask:
                return new
            return jnp.where(t_base + t < t_total, new, old)

        unroll = min(8, tT)

        if split:
            half = b_tile // 2

            def step(t, carry):
                h0, h1 = carry
                xp = xproj_ref[t]                      # (b_tile, H), contiguous
                # Two independent batch sub-blocks: the MXU push of the second
                # dot overlaps the VPU add + EUP tanh of the first.
                p0 = xp[:half].astype(jnp.float32) + jnp.dot(
                    h0.astype(cdt), w1, preferred_element_type=jnp.float32)
                p1 = xp[half:].astype(jnp.float32) + jnp.dot(
                    h1.astype(cdt), w1, preferred_element_type=jnp.float32)
                return guard(t, jnp.tanh(p0), h0), guard(t, jnp.tanh(p1), h1)

            h0, h1 = lax.fori_loop(
                0, tT, step, (h_ref[:half, :], h_ref[half:, :]), unroll=unroll)
            h_ref[:half, :] = h0
            h_ref[half:, :] = h1
        else:
            def step(t, h):
                xp = xproj_ref[t]
                pre = xp.astype(jnp.float32) + jnp.dot(
                    h.astype(cdt), w1, preferred_element_type=jnp.float32)
                return guard(t, jnp.tanh(pre), h)

            h_ref[...] = lax.fori_loop(0, tT, step, h_ref[...], unroll=unroll)

        @pl.when(t_idx == n_t - 1)
        def _epilogue():
            h = h_ref[...]
            logits = (jnp.dot(h, wout_ref[...],
                              preferred_element_type=jnp.float32)
                      + bout_ref[...])
            m = jnp.max(logits, axis=-1, keepdims=True)
            e = jnp.exp(logits - m)
            # Exact normalization: runs once per batch tile, cost negligible,
            # and keeps row sums at exactly ~1 (no approx-reciprocal error).
            out_ref[...] = e / jnp.sum(e, axis=-1, keepdims=True)

    return kernel


def rnn_dfa_forward(x, v1_w, w1_w, w1_b, wout_w, wout_b, *,
                    t_tile=256, b_tile_max=256,
                    compute_dtype=jnp.float32,
                    vmem_budget_bytes=40 * 1024 * 1024):
    """x: [B, T, I] float32. Weights in PyTorch nn.Linear convention:
       v1_w [H, I], w1_w [H, H], w1_b [H], wout_w [O, H], wout_b [O].
       Returns softmax output [B, O] (float32)."""
    B, T, I = x.shape
    H = w1_w.shape[0]
    O = wout_w.shape[0]
    f32 = jnp.float32

    # --- hoisted input projection (wrapper XLA ops) ------------------------
    # Transpose the raw input (the small side, [T,B,I]) instead of the
    # projection, then matmul straight into time-major [T,B,H]: no [T,B,H]
    # relayout is materialized in HBM.
    x_tm = jnp.transpose(x.astype(f32), (1, 0, 2))                   # [T, B, I]
    v1_t = jnp.transpose(v1_w).astype(f32)                           # [I, H]
    xproj = jnp.einsum('tbi,ih->tbh', x_tm, v1_t) + w1_b.astype(f32)[None, None, :]
    xproj = xproj.astype(compute_dtype)

    # --- batch tiling (sublane aligned, as large as allowed) ---------------
    b_pad8 = ((B + 7) // 8) * 8
    b_tile = max(8, (min(b_tile_max, b_pad8) // 8) * 8)
    B_pad = ((b_pad8 + b_tile - 1) // b_tile) * b_tile
    n_b = B_pad // b_tile            # "parallel" axis: >1 tiles use both v7x TCs

    # --- output class padding (lane-dense stores, softmax mask on pad) -----
    O_pad = ((O + 127) // 128) * 128

    # --- time tiling: multiple of 8, padded T, VMEM-budgeted ---------------
    csz = jnp.dtype(compute_dtype).itemsize
    tT = max(8, min(((t_tile + 7) // 8) * 8, ((T + 7) // 8) * 8))

    def vmem_bytes(tt):
        xb = 2 * tt * b_tile * H * csz                 # double-buffered stream
        wb = 2 * (H * H * csz + H * O_pad * 4 + 8 * O_pad * 4)
        ob = 2 * b_tile * O_pad * 4
        hb = b_tile * H * 4
        return xb + wb + ob + hb

    while tT > 8 and vmem_bytes(tT) > vmem_budget_bytes:
        tT = max(8, (tT // 16) * 8)                    # halve, keep multiple of 8

    T_pad = ((T + tT - 1) // tT) * tT
    n_t = T_pad // tT

    xproj = jnp.pad(xproj, ((0, T_pad - T), (0, B_pad - B), (0, 0)))

    # --- weights in kernel layout ------------------------------------------
    w1_t = jnp.transpose(w1_w).astype(compute_dtype)                 # [H, H]
    wout_t = jnp.pad(jnp.transpose(wout_w).astype(f32),
                     ((0, 0), (0, O_pad - O)))                       # [H, O_pad]
    bout = jnp.pad(wout_b.astype(f32), (0, O_pad - O),
                   constant_values=-1e30).reshape(1, O_pad)          # [1, O_pad]

    kernel = _make_kernel(t_total=T,
                          needs_mask=(T_pad != T),
                          split=(b_tile >= 16 and b_tile % 16 == 0))

    grid_spec = pltpu.PrefetchScalarGridSpec(
        num_scalar_prefetch=0,
        grid=(n_b, n_t),
        in_specs=[
            pl.BlockSpec((tT, b_tile, H), lambda bi, ti: (ti, bi, 0)),  # xproj
            pl.BlockSpec((H, H), lambda bi, ti: (0, 0)),                # W1^T
            pl.BlockSpec((H, O_pad), lambda bi, ti: (0, 0)),            # Wout^T
            pl.BlockSpec((1, O_pad), lambda bi, ti: (0, 0)),            # bout
        ],
        out_specs=pl.BlockSpec((b_tile, O_pad), lambda bi, ti: (bi, 0)),
        scratch_shapes=[pltpu.VMEM((b_tile, H), jnp.float32)],          # h carry
    )

    est = vmem_bytes(tT)
    vlimit = int(min(max(est * 3 // 2 + (2 << 20), 32 << 20), 100 << 20))

    out_pad = pl.pallas_call(
        kernel,
        out_shape=jax.ShapeDtypeStruct((B_pad, O_pad), jnp.float32),
        grid_spec=grid_spec,
        compiler_params=pltpu.CompilerParams(
            dimension_semantics=("parallel", "arbitrary"),
            vmem_limit_bytes=vlimit),
    )(xproj, w1_t, wout_t, bout)

    return out_pad[:B, :O]


def _reference_forward(x, v1_w, w1_w, w1_b, wout_w, wout_b):
    B, T, I = x.shape
    H = w1_w.shape[0]
    h = jnp.zeros((B, H), jnp.float32)
    for t in range(T):
        pre = x[:, t] @ v1_w.T + h @ w1_w.T + w1_b
        h = jnp.tanh(pre)
    logits = h @ wout_w.T + wout_b
    return jax.nn.softmax(logits, axis=-1)


def _make_params(key, I, H, O):
    k_w1w, k_w1b, k_v1, k_wow, k_wob = jax.random.split(key, 5)

    def lin_w(k, fan_out, fan_in):
        bound = 1.0 / jnp.sqrt(fan_in)
        return jax.random.uniform(k, (fan_out, fan_in), jnp.float32, -bound, bound)

    w1_w = lin_w(k_w1w, H, H)
    w1_b = jax.random.uniform(k_w1b, (H,), jnp.float32,
                              -1.0 / jnp.sqrt(H), 1.0 / jnp.sqrt(H))
    v1_w = lin_w(k_v1, H, I)
    wout_w = lin_w(k_wow, O, H)
    wout_b = jax.random.uniform(k_wob, (O,), jnp.float32,
                                -1.0 / jnp.sqrt(H), 1.0 / jnp.sqrt(H))
    return v1_w, w1_w, w1_b, wout_w, wout_b


if __name__ == "__main__":
    key = jax.random.PRNGKey(0)
    k1, k2, kp1, kp2 = jax.random.split(key, 4)

    # --- Test 1: tiny shapes, f32 MXU path, tight tolerance ----------------
    B, T, I, H, O = 2, 8, 16, 32, 10
    x = jax.random.normal(k1, (B, T, I), dtype=jnp.float32)
    v1_w, w1_w, w1_b, wout_w, wout_b = _make_params(kp1, I, H, O)

    out = rnn_dfa_forward(x, v1_w, w1_w, w1_b, wout_w, wout_b,
                          t_tile=8, compute_dtype=jnp.float32)
    out = jax.block_until_ready(out)
    ref = _reference_forward(x, v1_w, w1_w, w1_b, wout_w, wout_b)
    assert out.shape == (B, O)
    assert jnp.allclose(out, ref, atol=1e-3, rtol=1e-3), "f32 mismatch vs reference"

    # --- Test 2: larger batch, non-divisible T (exercises time padding +
    # in-kernel mask + multi-block h carry + batch sub-block split), bf16 MXU.
    B2, T2 = 32, 13
    x2 = jax.random.normal(k2, (B2, T2, I), dtype=jnp.float32)
    v1_w2, w1_w2, w1_b2, wout_w2, wout_b2 = _make_params(kp2, I, H, O)

    out2 = rnn_dfa_forward(x2, v1_w2, w1_w2, w1_b2, wout_w2, wout_b2,
                           t_tile=8, compute_dtype=jnp.bfloat16)
    out2 = jax.block_until_ready(out2)
    ref2 = _reference_forward(x2, v1_w2, w1_w2, w1_b2, wout_w2, wout_b2)
    assert out2.shape == (B2, O)
    assert jnp.allclose(out2, ref2, atol=2e-2, rtol=2e-2), "bf16 mismatch vs reference"

    print("KERNEL_OK")
</pallas_src>

<mosaic_0001>
module attributes {stable_mosaic.version = 11 : i64} {
  func.func @kernel(%arg0: i32, %arg1: i32, %arg2: memref<8x8x32xf32, #tpu.memory_space<vmem>>, %arg3: memref<32x32xf32, #tpu.memory_space<vmem>>, %arg4: memref<32x128xf32, #tpu.memory_space<vmem>>, %arg5: memref<1x128xf32, #tpu.memory_space<vmem>>, %arg6: memref<8x128xf32, #tpu.memory_space<vmem>>, %arg7: memref<8x32xf32, #tpu.memory_space<vmem>>) attributes {dimension_semantics = [#tpu.dimension_semantics<parallel>, #tpu.dimension_semantics<arbitrary>], iteration_bounds = array<i64: 1, 1>, scalar_prefetch = 0 : i64, scratch_operands = 1 : i64, tpu.core_type = #tpu.core_type<tc>, window_params = [{transform_indices = @transform_0, window_bounds = array<i64: 8, 8, 32>}, {pipeline_mode = #tpu.pipeline_mode<synchronous>, transform_indices = @transform_1, window_bounds = array<i64: 32, 32>}, {pipeline_mode = #tpu.pipeline_mode<synchronous>, transform_indices = @transform_2, window_bounds = array<i64: 32, 128>}, {pipeline_mode = #tpu.pipeline_mode<synchronous>, transform_indices = @transform_3, window_bounds = array<i64: 1, 128>}, {transform_indices = @transform_4, window_bounds = array<i64: 8, 128>}]} {
    %c0_i32 = arith.constant 0 : i32
    %0 = arith.cmpi eq, %arg1, %c0_i32 : i32
    %1 = arith.extui %0 : i1 to i32
    %c0_i32_0 = arith.constant 0 : i32
    %2 = arith.cmpi ne, %1, %c0_i32_0 : i32
    scf.if %2 {
      %cst_32 = arith.constant 0.000000e+00 : f32
      %57 = vector.broadcast %cst_32 : f32 to vector<8x32xf32>
      %c0_33 = arith.constant 0 : index
      %c0_34 = arith.constant 0 : index
      %58 = vector.load %arg7[%c0_33, %c0_34] : memref<8x32xf32, #tpu.memory_space<vmem>>, vector<8x32xf32>
      tpu.vector_store %arg7[%c0_33, %c0_34], %57 {strides = array<i32>} : memref<8x32xf32, #tpu.memory_space<vmem>>, vector<8x32xf32>,
    } else {
    }
    %c0 = arith.constant 0 : index
    %c0_1 = arith.constant 0 : index
    %3 = vector.load %arg3[%c0, %c0_1] : memref<32x32xf32, #tpu.memory_space<vmem>>, vector<32x32xf32>
    %c0_2 = arith.constant 0 : index
    %c0_3 = arith.constant 0 : index
    %4 = vector.load %arg7[%c0_2, %c0_3] : memref<8x32xf32, #tpu.memory_space<vmem>>, vector<8x32xf32>
    %c0_i32_4 = arith.constant 0 : i32
    %5 = arith.index_cast %c0_i32_4 : i32 to index
    %c0_5 = arith.constant 0 : index
    %c0_6 = arith.constant 0 : index
    %6 = vector.load %arg2[%5, %c0_5, %c0_6] : memref<8x8x32xf32, #tpu.memory_space<vmem>>, vector<1x8x32xf32>
    %7 = vector.shape_cast %6 : vector<1x8x32xf32> to vector<8x32xf32>
    %cst = arith.constant dense<0.000000e+00> : vector<8x32xf32>
    %8 = tpu.matmul %4, %3, %cst {dimension_numbers = #tpu.dot_dimension_numbers<[1], [0], [0], [1], [0, 0, 1, 1], [], []>} : vector<8x32xf32>, vector<32x32xf32>, vector<8x32xf32> -> vector<8x32xf32>
    %9 = arith.addf %7, %8 : vector<8x32xf32>
    %10 = math.tanh %9 : vector<8x32xf32>
    %c1_i32 = arith.constant 1 : i32
    %11 = arith.index_cast %c1_i32 : i32 to index
    %c0_7 = arith.constant 0 : index
    %c0_8 = arith.constant 0 : index
    %12 = vector.load %arg2[%11, %c0_7, %c0_8] : memref<8x8x32xf32, #tpu.memory_space<vmem>>, vector<1x8x32xf32>
    %13 = vector.shape_cast %12 : vector<1x8x32xf32> to vector<8x32xf32>
    %cst_9 = arith.constant dense<0.000000e+00> : vector<8x32xf32>
    %14 = tpu.matmul %10, %3, %cst_9 {dimension_numbers = #tpu.dot_dimension_numbers<[1], [0], [0], [1], [0, 0, 1, 1], [], []>} : vector<8x32xf32>, vector<32x32xf32>, vector<8x32xf32> -> vector<8x32xf32>
    %15 = arith.addf %13, %14 : vector<8x32xf32>
    %16 = math.tanh %15 : vector<8x32xf32>
    %c2_i32 = arith.constant 2 : i32
    %17 = arith.index_cast %c2_i32 : i32 to index
    %c0_10 = arith.constant 0 : index
    %c0_11 = arith.constant 0 : index
    %18 = vector.load %arg2[%17, %c0_10, %c0_11] : memref<8x8x32xf32, #tpu.memory_space<vmem>>, vector<1x8x32xf32>
    %19 = vector.shape_cast %18 : vector<1x8x32xf32> to vector<8x32xf32>
    %cst_12 = arith.constant dense<0.000000e+00> : vector<8x32xf32>
    %20 = tpu.matmul %16, %3, %cst_12 {dimension_numbers = #tpu.dot_dimension_numbers<[1], [0], [0], [1], [0, 0, 1, 1], [], []>} : vector<8x32xf32>, vector<32x32xf32>, vector<8x32xf32> -> vector<8x32xf32>
    %21 = arith.addf %19, %20 : vector<8x32xf32>
    %22 = math.tanh %21 : vector<8x32xf32>
    %c3_i32 = arith.constant 3 : i32
    %23 = arith.index_cast %c3_i32 : i32 to index
    %c0_13 = arith.constant 0 : index
    %c0_14 = arith.constant 0 : index
    %24 = vector.load %arg2[%23, %c0_13, %c0_14] : memref<8x8x32xf32, #tpu.memory_space<vmem>>, vector<1x8x32xf32>
    %25 = vector.shape_cast %24 : vector<1x8x32xf32> to vector<8x32xf32>
    %cst_15 = arith.constant dense<0.000000e+00> : vector<8x32xf32>
    %26 = tpu.matmul %22, %3, %cst_15 {dimension_numbers = #tpu.dot_dimension_numbers<[1], [0], [0], [1], [0, 0, 1, 1], [], []>} : vector<8x32xf32>, vector<32x32xf32>, vector<8x32xf32> -> vector<8x32xf32>
    %27 = arith.addf %25, %26 : vector<8x32xf32>
    %28 = math.tanh %27 : vector<8x32xf32>
    %c4_i32 = arith.constant 4 : i32
    %29 = arith.index_cast %c4_i32 : i32 to index
    %c0_16 = arith.constant 0 : index
    %c0_17 = arith.constant 0 : index
    %30 = vector.load %arg2[%29, %c0_16, %c0_17] : memref<8x8x32xf32, #tpu.memory_space<vmem>>, vector<1x8x32xf32>
    %31 = vector.shape_cast %30 : vector<1x8x32xf32> to vector<8x32xf32>
    %cst_18 = arith.constant dense<0.000000e+00> : vector<8x32xf32>
    %32 = tpu.matmul %28, %3, %cst_18 {dimension_numbers = #tpu.dot_dimension_numbers<[1], [0], [0], [1], [0, 0, 1, 1], [], []>} : vector<8x32xf32>, vector<32x32xf32>, vector<8x32xf32> -> vector<8x32xf32>
    %33 = arith.addf %31, %32 : vector<8x32xf32>
    %34 = math.tanh %33 : vector<8x32xf32>
    %c5_i32 = arith.constant 5 : i32
    %35 = arith.index_cast %c5_i32 : i32 to index
    %c0_19 = arith.constant 0 : index
    %c0_20 = arith.constant 0 : index
    %36 = vector.load %arg2[%35, %c0_19, %c0_20] : memref<8x8x32xf32, #tpu.memory_space<vmem>>, vector<1x8x32xf32>
    %37 = vector.shape_cast %36 : vector<1x8x32xf32> to vector<8x32xf32>
    %cst_21 = arith.constant dense<0.000000e+00> : vector<8x32xf32>
    %38 = tpu.matmul %34, %3, %cst_21 {dimension_numbers = #tpu.dot_dimension_numbers<[1], [0], [0], [1], [0, 0, 1, 1], [], []>} : vector<8x32xf32>, vector<32x32xf32>, vector<8x32xf32> -> vector<8x32xf32>
    %39 = arith.addf %37, %38 : vector<8x32xf32>
    %40 = math.tanh %39 : vector<8x32xf32>
    %c6_i32 = arith.constant 6 : i32
    %41 = arith.index_cast %c6_i32 : i32 to index
    %c0_22 = arith.constant 0 : index
    %c0_23 = arith.constant 0 : index
    %42 = vector.load %arg2[%41, %c0_22, %c0_23] : memref<8x8x32xf32, #tpu.memory_space<vmem>>, vector<1x8x32xf32>
    %43 = vector.shape_cast %42 : vector<1x8x32xf32> to vector<8x32xf32>
    %cst_24 = arith.constant dense<0.000000e+00> : vector<8x32xf32>
    %44 = tpu.matmul %40, %3, %cst_24 {dimension_numbers = #tpu.dot_dimension_numbers<[1], [0], [0], [1], [0, 0, 1, 1], [], []>} : vector<8x32xf32>, vector<32x32xf32>, vector<8x32xf32> -> vector<8x32xf32>
    %45 = arith.addf %43, %44 : vector<8x32xf32>
    %46 = math.tanh %45 : vector<8x32xf32>
    %c7_i32 = arith.constant 7 : i32
    %47 = arith.index_cast %c7_i32 : i32 to index
    %c0_25 = arith.constant 0 : index
    %c0_26 = arith.constant 0 : index
    %48 = vector.load %arg2[%47, %c0_25, %c0_26] : memref<8x8x32xf32, #tpu.memory_space<vmem>>, vector<1x8x32xf32>
    %49 = vector.shape_cast %48 : vector<1x8x32xf32> to vector<8x32xf32>
    %cst_27 = arith.constant dense<0.000000e+00> : vector<8x32xf32>
    %50 = tpu.matmul %46, %3, %cst_27 {dimension_numbers = #tpu.dot_dimension_numbers<[1], [0], [0], [1], [0, 0, 1, 1], [], []>} : vector<8x32xf32>, vector<32x32xf32>, vector<8x32xf32> -> vector<8x32xf32>
    %51 = arith.addf %49, %50 : vector<8x32xf32>
    %52 = math.tanh %51 : vector<8x32xf32>
    %c8_i32 = arith.constant 8 : i32
    %c0_28 = arith.constant 0 : index
    %c0_29 = arith.constant 0 : index
    %53 = vector.load %arg7[%c0_28, %c0_29] : memref<8x32xf32, #tpu.memory_space<vmem>>, vector<8x32xf32>
    tpu.vector_store %arg7[%c0_28, %c0_29], %52 {strides = array<i32>} : memref<8x32xf32, #tpu.memory_space<vmem>>, vector<8x32xf32>,
    %c0_i32_30 = arith.constant 0 : i32
    %54 = arith.cmpi eq, %arg1, %c0_i32_30 : i32
    %55 = arith.extui %54 : i1 to i32
    %c0_i32_31 = arith.constant 0 : i32
    %56 = arith.cmpi ne, %55, %c0_i32_31 : i32
    scf.if %56 {
      %c0_32 = arith.constant 0 : index
      %c0_33 = arith.constant 0 : index
      %57 = vector.load %arg7[%c0_32, %c0_33] : memref<8x32xf32, #tpu.memory_space<vmem>>, vector<8x32xf32>
      %c0_34 = arith.constant 0 : index
      %c0_35 = arith.constant 0 : index
      %58 = vector.load %arg4[%c0_34, %c0_35] : memref<32x128xf32, #tpu.memory_space<vmem>>, vector<32x128xf32>
      %cst_36 = arith.constant dense<0.000000e+00> : vector<8x128xf32>
      %59 = tpu.matmul %57, %58, %cst_36 {dimension_numbers = #tpu.dot_dimension_numbers<[1], [0], [0], [1], [0, 0, 1, 1], [], []>} : vector<8x32xf32>, vector<32x128xf32>, vector<8x128xf32> -> vector<8x128xf32>
      %c0_37 = arith.constant 0 : index
      %c0_38 = arith.constant 0 : index
      %60 = vector.load %arg5[%c0_37, %c0_38] : memref<1x128xf32, #tpu.memory_space<vmem>>, vector<1x128xf32>
      %61 = vector.broadcast %60 : vector<1x128xf32> to vector<8x128xf32>
      %62 = arith.addf %59, %61 : vector<8x128xf32>
      %cst_39 = arith.constant dense<0xFF800000> : vector<8xf32>
      %63 = vector.multi_reduction <maximumf>, %62, %cst_39 [1] : vector<8x128xf32> to vector<8xf32>
      %64 = vector.shape_cast %63 : vector<8xf32> to vector<8x1xf32>
      %65 = vector.broadcast %64 : vector<8x1xf32> to vector<8x128xf32>
      %66 = arith.subf %62, %65 : vector<8x128xf32>
      %67 = math.exp %66 : vector<8x128xf32>
      %cst_40 = arith.constant dense<0.000000e+00> : vector<8xf32>
      %68 = vector.multi_reduction <add>, %67, %cst_40 [1] : vector<8x128xf32> to vector<8xf32>
      %69 = vector.shape_cast %68 : vector<8xf32> to vector<8x1xf32>
      %70 = vector.broadcast %69 : vector<8x1xf32> to vector<8x128xf32>
      %71 = arith.divf %67, %70 : vector<8x128xf32>
      %c0_41 = arith.constant 0 : index
      %c0_42 = arith.constant 0 : index
      %72 = vector.load %arg6[%c0_41, %c0_42] : memref<8x128xf32, #tpu.memory_space<vmem>>, vector<8x128xf32>
      tpu.vector_store %arg6[%c0_41, %c0_42], %71 {strides = array<i32>} : memref<8x128xf32, #tpu.memory_space<vmem>>, vector<8x128xf32>,
    } else {
    }
    return
  }
  func.func @transform_0(%arg0: i32, %arg1: i32) -> (i32, i32, i32) {
    %c0_i32 = arith.constant 0 : i32
    %c0_i32_0 = arith.constant 0 : i32
    return %arg1, %arg0, %c0_i32 : i32, i32, i32
  }
  func.func @transform_1(%arg0: i32, %arg1: i32) -> (i32, i32) {
    %c0_i32 = arith.constant 0 : i32
    %c0_i32_0 = arith.constant 0 : i32
    %c0_i32_1 = arith.constant 0 : i32
    return %c0_i32, %c0_i32_0 : i32, i32
  }
  func.func @transform_2(%arg0: i32, %arg1: i32) -> (i32, i32) {
    %c0_i32 = arith.constant 0 : i32
    %c0_i32_0 = arith.constant 0 : i32
    %c0_i32_1 = arith.constant 0 : i32
    return %c0_i32, %c0_i32_0 : i32, i32
  }
  func.func @transform_3(%arg0: i32, %arg1: i32) -> (i32, i32) {
    %c0_i32 = arith.constant 0 : i32
    %c0_i32_0 = arith.constant 0 : i32
    %c0_i32_1 = arith.constant 0 : i32
    return %c0_i32, %c0_i32_0 : i32, i32
  }
  func.func @transform_4(%arg0: i32, %arg1: i32) -> (i32, i32) {
    %c0_i32 = arith.constant 0 : i32
    %c0_i32_0 = arith.constant 0 : i32
    return %arg0, %c0_i32 : i32, i32
  }
}

</mosaic_0001>

<llo_original>
// kernel: tpu_custom_call.1
$region0: #{tpu_custom_call.1}
  #allocation0 [shape = 'u32[]', space=smem, size = 0x4, offset = 0x4, fixed_abs, tag = 'smem constant byte address 0x4 - core index']
  #allocation1 [shape = 'u32[144,128]{1,0:T(1,128)}', space=vmem, size = 0x12000, scoped, tag = 'internal scratch']
  #allocation2 [shape = 'f32[8,32]{1,0:T(8,128)}', space=vmem, size = 0x1000, scoped, tag = 'scratch operand']
  %s0 = inlined_call_operand.hbm [shape: f32[8,8,32], index: 0, kind: input, shape index: {}]
  %s1 = inlined_call_operand.hbm [shape: f32[32,32], index: 1, kind: input, shape index: {}]
  %s2 = inlined_call_operand.hbm [shape: f32[32,128], index: 2, kind: input, shape index: {}]
  %s3 = inlined_call_operand.vmem [shape: f32[1,128], index: 3, kind: input, shape index: {}]
  %s4 = inlined_call_operand.hbm [shape: f32[8,128], index: 4, kind: output, shape index: {}]
  %s5 = sld [smem:[#allocation0]]
  $region46: #{tpu_custom_call.1} parent=0
    _
  %s7 = ssub.s32 1, %s5
  %s8 = scalar_select 0, %s7, %s5
  $region1: #{tpu_custom_call.1} parent=0
    #allocation3 [shape = 'u8[32768]{0}', space=vmem, size = 0x8000, scoped, tag = 'input window, operand 0, single buffered']
    #allocation4 [shape = 's32[1]{0}', space=sflag, size = 0x4, scoped, tag = 'scoped memory for tpu_custom_call.1']
    #allocation5 [shape = 's32[1]{0}', space=sflag, size = 0x4, scoped, tag = 'scoped memory for tpu_custom_call.1']
    #allocation6 [shape = 'u8[16384]{0}', space=vmem, size = 0x4000, scoped, tag = 'input window, operand 1, single buffered']
    #allocation7 [shape = 's32[1]{0}', space=sflag, size = 0x4, scoped, tag = 'scoped memory for tpu_custom_call.1']
    #allocation8 [shape = 'u8[16384]{0}', space=vmem, size = 0x4000, scoped, tag = 'input window, operand 2, single buffered']
    #allocation9 [shape = 'u8[4096]{0}', space=vmem, size = 0x1000, scoped, tag = 'output window, operand 0, single buffered']
    %9 = vsyncpa [#allocation4], 0
    %10 = vsyncpa [#allocation7], 0
    %11 = vsyncpa [#allocation5], 0
    // Predicated region
    $region2: #{tpu_custom_call.1} parent=1 // pred_check
      _
    $region3: #{tpu_custom_call.1} parent=1 // pred_check_branch
      %13 = sbr.rel (0) target = $region5
    $region4: #{tpu_custom_call.1} parent=1 // pred_region
      %s15 = ssub.s32 1024, 1024
      %16 = vsyncadd [#allocation4], %s15
      %s17 = sshll.u32 [#allocation3], 4
      %s18 = int_to_ptr.vmem [resolvable:$true] %s17
      %23 = dma.hbm_to_vmem [thread:$0]  %s0, 1024, %s18, [#allocation4], 128, 128, 8
    $region5: #{tpu_custom_call.1} parent=1 // pred_fallthru
      _
    // Predicated region
    $region6: #{tpu_custom_call.1} parent=1 // pred_check
      _
    $region7: #{tpu_custom_call.1} parent=1 // pred_check_branch
      %25 = sbr.rel (0) target = $region9
    $region8: #{tpu_custom_call.1} parent=1 // pred_region
      %s27 = ssub.s32 512, 512
      %28 = vsyncadd [#allocation7], %s27
      %s29 = sshll.u32 [#allocation6], 4
      %s30 = int_to_ptr.vmem [resolvable:$true] %s29
      %35 = dma.hbm_to_vmem [thread:$0]  %s1, 512, %s30, [#allocation7], 128, 128, 8
    $region9: #{tpu_custom_call.1} parent=1 // pred_fallthru
      _
    // Predicated region
    $region10: #{tpu_custom_call.1} parent=1 // pred_check
      _
    $region11: #{tpu_custom_call.1} parent=1 // pred_check_branch
      %37 = sbr.rel (0) target = $region13
    $region12: #{tpu_custom_call.1} parent=1 // pred_region
      %s39 = ssub.s32 512, 512
      %40 = vsyncadd [#allocation7], %s39
      %s41 = sshll.u32 [#allocation8], 4
      %s42 = int_to_ptr.vmem [resolvable:$true] %s41
      %47 = dma.hbm_to_vmem [thread:$0]  %s2, 512, %s42, [#allocation7], 128, 128, 8
    $region13: #{tpu_custom_call.1} parent=1 // pred_fallthru
      _
    // Predicated region
    $region14: #{tpu_custom_call.1} parent=1 // pred_check
      _
    $region15: #{tpu_custom_call.1} parent=1 // pred_check_branch
      %49 = sbr.rel (0) target = $region17
    $region16: #{tpu_custom_call.1} parent=1 // pred_region
      _
    $region17: #{tpu_custom_call.1} parent=1 // pred_fallthru
      _
    // Predicated region
    $region18: #{tpu_custom_call.1} parent=1 // pred_check
      _
    $region19: #{tpu_custom_call.1} parent=1 // pred_check_branch
      %51 = sbr.rel (0) target = $region21
    $region20: #{tpu_custom_call.1} parent=1 // pred_region
      %52 = dma.done [#allocation4], 1024
    $region21: #{tpu_custom_call.1} parent=1 // pred_fallthru
      _
    // Predicated region
    $region22: #{tpu_custom_call.1} parent=1 // pred_check
      _
    $region23: #{tpu_custom_call.1} parent=1 // pred_check_branch
      %54 = sbr.rel (0) target = $region25
    $region24: #{tpu_custom_call.1} parent=1 // pred_region
      %55 = dma.done [#allocation7], 512
    $region25: #{tpu_custom_call.1} parent=1 // pred_fallthru
      _
    // Predicated region
    $region26: #{tpu_custom_call.1} parent=1 // pred_check
      _
    $region27: #{tpu_custom_call.1} parent=1 // pred_check_branch
      %57 = sbr.rel (0) target = $region29
    $region28: #{tpu_custom_call.1} parent=1 // pred_region
      %58 = dma.done [#allocation7], 512
    $region29: #{tpu_custom_call.1} parent=1 // pred_fallthru
      _
    %p59 = scmp.eq.s32.totalorder 0, 0
    // Predicated region
    $region30: #{tpu_custom_call.1} parent=1 // pred_check
      %p60 = pneg %p59
    $region31: #{tpu_custom_call.1} parent=1 // pred_check_branch
      %62 = sbr.rel (%p60) target = $region33
    $region32: #{tpu_custom_call.1} parent=1 // pred_region
      %vm63 = vcmask 261120
      %64 = vst.msk [vmem:[#allocation2] sm:$0xff] %vm63, 0.0
    $region33: #{tpu_custom_call.1} parent=1 // pred_fallthru
      _
    %v65 = vld [vmem:[#allocation6] sm:$0xff]
    %v66 = vld [vmem:[#allocation6 + $0x8] sm:$0xff]
    %v67 = vld [vmem:[#allocation6 + $0x10] sm:$0xff]
    %v68 = vld [vmem:[#allocation6 + $0x18] sm:$0xff]
    %v69 = vld [vmem:[#allocation2] sm:$0xff]
    %v70 = vld [vmem:[#allocation3] sm:$0xff]
    %vm71 = vcmask 261120
    %v73 = vsel %vm71, %v69, 0
    %75 = vmatprep.subr.mxu0 0.0
    %76 = vmatpush1.msra.mxu0 %v65
    %77 = vmatprep.subr.mxu0 0.0
    %78 = vmatpush1.msra.mxu0 %v66
    %79 = vmatprep.subr.mxu0 0.0
    %80 = vmatpush1.msra.mxu0 %v67
    %81 = vmatprep.subr.mxu0 0.0
    %82 = vmatpush1.msra.mxu0 %v68
    %83 = vmatprep.subr.mxu0 0.0
    %84 = vmatpush1.msra.mxu0 0.0
    %85 = vmatprep.subr.mxu0 0.0
    %86 = vmatpush1.msra.mxu0 0.0
    %87 = vmatprep.subr.mxu0 0.0
    %88 = vmatpush1.msra.mxu0 0.0
    %89 = vmatprep.subr.mxu0 0.0
    %90 = vmatpush1.msra.mxu0 0.0
    %91 = vmatprep.subr.mxu0 0.0
    %92 = vmatpush1.msra.mxu0 0.0
    %93 = vmatprep.subr.mxu0 0.0
    %94 = vmatpush1.msra.mxu0 0.0
    %95 = vmatprep.subr.mxu0 0.0
    %96 = vmatpush1.msra.mxu0 0.0
    %97 = vmatprep.subr.mxu0 0.0
    %98 = vmatpush1.msra.mxu0 0.0
    %99 = vmatprep.subr.mxu0 0.0
    %100 = vmatpush1.msra.mxu0 0.0
    %101 = vmatprep.subr.mxu0 0.0
    %102 = vmatpush1.msra.mxu0 0.0
    %103 = vmatprep.subr.mxu0 0.0
    %104 = vmatpush1.msra.mxu0 0.0
    %105 = vmatprep.subr.mxu0 0.0
    %106 = vmatpush1.msra.mxu0 0.0
    %107 = vmatprep.subr.mxu0 0.0
    %108 = vmatpush1.msra.mxu0 0.0
    %109 = vmatprep.subr.mxu0 0.0
    %110 = vmatpush1.msra.mxu0 0.0
    %111 = vmatprep.subr.mxu0 0.0
    %112 = vmatpush1.msra.mxu0 0.0
    %113 = vmatprep.subr.mxu0 0.0
    %114 = vmatpush1.msra.mxu0 0.0
    %115 = vmatprep.subr.mxu0 0.0
    %116 = vmatpush1.msra.mxu0 0.0
    %117 = vmatprep.subr.mxu0 0.0
    %118 = vmatpush1.msra.mxu0 0.0
    %119 = vmatprep.subr.mxu0 0.0
    %120 = vmatpush1.msra.mxu0 0.0
    %121 = vmatprep.subr.mxu0 0.0
    %122 = vmatpush1.msra.mxu0 0.0
    %123 = vmatprep.subr.mxu0 0.0
    %124 = vmatpush1.msra.mxu0 0.0
    %125 = vmatprep.subr.mxu0 0.0
    %126 = vmatpush1.msra.mxu0 0.0
    %127 = vmatprep.subr.mxu0 0.0
    %128 = vmatpush1.msra.mxu0 0.0
    %129 = vmatprep.subr.mxu0 0.0
    %130 = vmatpush1.msra.mxu0 0.0
    %131 = vmatprep.subr.mxu0 0.0
    %132 = vmatpush1.msra.mxu0 0.0
    %133 = vmatprep.subr.mxu0 0.0
    %134 = vmatpush1.msra.mxu0 0.0
    %135 = vmatprep.subr.mxu0 0.0
    %136 = vmatpush1.msra.mxu0 0.0
    %137 = vmatprep.subr.mxu0 0.0
    %138 = vmatpush1.msra.mxu0 0.0
    %139 = vmatprep.mubr.f32.mxu0 0.0
    %140 = vmatmul.mubr.f32.gmra.mrb[0].mxu0 %v73
    %v141 = vpop.f32.mrb[0].mxu0
    %v142 = vadd.f32 0.0, %v141
    %v143 = vpop.f32.mrb[0].mxu0
    %144 = vdwg.mxu0
    %v145 = vadd.f32 %v70, %v142
    %v146 = vtanh.pop %v145
    %s147 = scalar_lea.vmem [#allocation3], 8
    %v148 = vld [vmem:[%s147] sm:$0xff]
    %v150 = vsel %vm71, %v146, 0
    %152 = vmatprep.subr.mxu0 0.0
    %153 = vmatpush1.msra.mxu0 %v65
    %154 = vmatprep.subr.mxu0 0.0
    %155 = vmatpush1.msra.mxu0 %v66
    %156 = vmatprep.subr.mxu0 0.0
    %157 = vmatpush1.msra.mxu0 %v67
    %158 = vmatprep.subr.mxu0 0.0
    %159 = vmatpush1.msra.mxu0 %v68
    %160 = vmatprep.subr.mxu0 0.0
    %161 = vmatpush1.msra.mxu0 0.0
    %162 = vmatprep.subr.mxu0 0.0
    %163 = vmatpush1.msra.mxu0 0.0
    %164 = vmatprep.subr.mxu0 0.0
    %165 = vmatpush1.msra.mxu0 0.0
    %166 = vmatprep.subr.mxu0 0.0
    %167 = vmatpush1.msra.mxu0 0.0
    %168 = vmatprep.subr.mxu0 0.0
    %169 = vmatpush1.msra.mxu0 0.0
    %170 = vmatprep.subr.mxu0 0.0
    %171 = vmatpush1.msra.mxu0 0.0
    %172 = vmatprep.subr.mxu0 0.0
    %173 = vmatpush1.msra.mxu0 0.0
    %174 = vmatprep.subr.mxu0 0.0
    %175 = vmatpush1.msra.mxu0 0.0
    %176 = vmatprep.subr.mxu0 0.0
    %177 = vmatpush1.msra.mxu0 0.0
    %178 = vmatprep.subr.mxu0 0.0
    %179 = vmatpush1.msra.mxu0 0.0
    %180 = vmatprep.subr.mxu0 0.0
    %181 = vmatpush1.msra.mxu0 0.0
    %182 = vmatprep.subr.mxu0 0.0
    %183 = vmatpush1.msra.mxu0 0.0
    %184 = vmatprep.subr.mxu0 0.0
    %185 = vmatpush1.msra.mxu0 0.0
    %186 = vmatprep.subr.mxu0 0.0
    %187 = vmatpush1.msra.mxu0 0.0
    %188 = vmatprep.subr.mxu0 0.0
    %189 = vmatpush1.msra.mxu0 0.0
    %190 = vmatprep.subr.mxu0 0.0
    %191 = vmatpush1.msra.mxu0 0.0
    %192 = vmatprep.subr.mxu0 0.0
    %193 = vmatpush1.msra.mxu0 0.0
    %194 = vmatprep.subr.mxu0 0.0
    %195 = vmatpush1.msra.mxu0 0.0
    %196 = vmatprep.subr.mxu0 0.0
    %197 = vmatpush1.msra.mxu0 0.0
    %198 = vmatprep.subr.mxu0 0.0
    %199 = vmatpush1.msra.mxu0 0.0
    %200 = vmatprep.subr.mxu0 0.0
    %201 = vmatpush1.msra.mxu0 0.0
    %202 = vmatprep.subr.mxu0 0.0
    %203 = vmatpush1.msra.mxu0 0.0
    %204 = vmatprep.subr.mxu0 0.0
    %205 = vmatpush1.msra.mxu0 0.0
    %206 = vmatprep.subr.mxu0 0.0
    %207 = vmatpush1.msra.mxu0 0.0
    %208 = vmatprep.subr.mxu0 0.0
    %209 = vmatpush1.msra.mxu0 0.0
    %210 = vmatprep.subr.mxu0 0.0
    %211 = vmatpush1.msra.mxu0 0.0
    %212 = vmatprep.subr.mxu0 0.0
    %213 = vmatpush1.msra.mxu0 0.0
    %214 = vmatprep.subr.mxu0 0.0
    %215 = vmatpush1.msra.mxu0 0.0
    %216 = vmatprep.mubr.f32.mxu0 0.0
    %217 = vmatmul.mubr.f32.gmra.mrb[0].mxu0 %v150
    %v218 = vpop.f32.mrb[0].mxu0
    %v219 = vadd.f32 0.0, %v218
    %v220 = vpop.f32.mrb[0].mxu0
    %221 = vdwg.mxu0
    %v222 = vadd.f32 %v148, %v219
    %v223 = vtanh.pop %v222
    %s224 = scalar_lea.vmem [#allocation3], 16
    %v225 = vld [vmem:[%s224] sm:$0xff]
    %v227 = vsel %vm71, %v223, 0
    %229 = vmatprep.subr.mxu0 0.0
    %230 = vmatpush1.msra.mxu0 %v65
    %231 = vmatprep.subr.mxu0 0.0
    %232 = vmatpush1.msra.mxu0 %v66
    %233 = vmatprep.subr.mxu0 0.0
    %234 = vmatpush1.msra.mxu0 %v67
    %235 = vmatprep.subr.mxu0 0.0
    %236 = vmatpush1.msra.mxu0 %v68
    %237 = vmatprep.subr.mxu0 0.0
    %238 = vmatpush1.msra.mxu0 0.0
    %239 = vmatprep.subr.mxu0 0.0
    %240 = vmatpush1.msra.mxu0 0.0
    %241 = vmatprep.subr.mxu0 0.0
    %242 = vmatpush1.msra.mxu0 0.0
    %243 = vmatprep.subr.mxu0 0.0
    %244 = vmatpush1.msra.mxu0 0.0
    %245 = vmatprep.subr.mxu0 0.0
    %246 = vmatpush1.msra.mxu0 0.0
    %247 = vmatprep.subr.mxu0 0.0
    %248 = vmatpush1.msra.mxu0 0.0
    %249 = vmatprep.subr.mxu0 0.0
    %250 = vmatpush1.msra.mxu0 0.0
    %251 = vmatprep.subr.mxu0 0.0
    %252 = vmatpush1.msra.mxu0 0.0
    %253 = vmatprep.subr.mxu0 0.0
    %254 = vmatpush1.msra.mxu0 0.0
    %255 = vmatprep.subr.mxu0 0.0
    %256 = vmatpush1.msra.mxu0 0.0
    %257 = vmatprep.subr.mxu0 0.0
    %258 = vmatpush1.msra.mxu0 0.0
    %259 = vmatprep.subr.mxu0 0.0
    %260 = vmatpush1.msra.mxu0 0.0
    %261 = vmatprep.subr.mxu0 0.0
    %262 = vmatpush1.msra.mxu0 0.0
    %263 = vmatprep.subr.mxu0 0.0
    %264 = vmatpush1.msra.mxu0 0.0
    %265 = vmatprep.subr.mxu0 0.0
    %266 = vmatpush1.msra.mxu0 0.0
    %267 = vmatprep.subr.mxu0 0.0
    %268 = vmatpush1.msra.mxu0 0.0
    %269 = vmatprep.subr.mxu0 0.0
    %270 = vmatpush1.msra.mxu0 0.0
    %271 = vmatprep.subr.mxu0 0.0
    %272 = vmatpush1.msra.mxu0 0.0
    %273 = vmatprep.subr.mxu0 0.0
    %274 = vmatpush1.msra.mxu0 0.0
    %275 = vmatprep.subr.mxu0 0.0
    %276 = vmatpush1.msra.mxu0 0.0
    %277 = vmatprep.subr.mxu0 0.0
    %278 = vmatpush1.msra.mxu0 0.0
    %279 = vmatprep.subr.mxu0 0.0
    %280 = vmatpush1.msra.mxu0 0.0
    %281 = vmatprep.subr.mxu0 0.0
    %282 = vmatpush1.msra.mxu0 0.0
    %283 = vmatprep.subr.mxu0 0.0
    %284 = vmatpush1.msra.mxu0 0.0
    %285 = vmatprep.subr.mxu0 0.0
    %286 = vmatpush1.msra.mxu0 0.0
    %287 = vmatprep.subr.mxu0 0.0
    %288 = vmatpush1.msra.mxu0 0.0
    %289 = vmatprep.subr.mxu0 0.0
    %290 = vmatpush1.msra.mxu0 0.0
    %291 = vmatprep.subr.mxu0 0.0
    %292 = vmatpush1.msra.mxu0 0.0
    %293 = vmatprep.mubr.f32.mxu0 0.0
    %294 = vmatmul.mubr.f32.gmra.mrb[0].mxu0 %v227
    %v295 = vpop.f32.mrb[0].mxu0
    %v296 = vadd.f32 0.0, %v295
    %v297 = vpop.f32.mrb[0].mxu0
    %298 = vdwg.mxu0
    %v299 = vadd.f32 %v225, %v296
    %v300 = vtanh.pop %v299
    %s301 = scalar_lea.vmem [#allocation3], 24
    %v302 = vld [vmem:[%s301] sm:$0xff]
    %v304 = vsel %vm71, %v300, 0
    %306 = vmatprep.subr.mxu0 0.0
    %307 = vmatpush1.msra.mxu0 %v65
    %308 = vmatprep.subr.mxu0 0.0
    %309 = vmatpush1.msra.mxu0 %v66
    %310 = vmatprep.subr.mxu0 0.0
    %311 = vmatpush1.msra.mxu0 %v67
    %312 = vmatprep.subr.mxu0 0.0
    %313 = vmatpush1.msra.mxu0 %v68
    %314 = vmatprep.subr.mxu0 0.0
    %315 = vmatpush1.msra.mxu0 0.0
    %316 = vmatprep.subr.mxu0 0.0
    %317 = vmatpush1.msra.mxu0 0.0
    %318 = vmatprep.subr.mxu0 0.0
    %319 = vmatpush1.msra.mxu0 0.0
    %320 = vmatprep.subr.mxu0 0.0
    %321 = vmatpush1.msra.mxu0 0.0
    %322 = vmatprep.subr.mxu0 0.0
    %323 = vmatpush1.msra.mxu0 0.0
    %324 = vmatprep.subr.mxu0 0.0
    %325 = vmatpush1.msra.mxu0 0.0
    %326 = vmatprep.subr.mxu0 0.0
    %327 = vmatpush1.msra.mxu0 0.0
    %328 = vmatprep.subr.mxu0 0.0
    %329 = vmatpush1.msra.mxu0 0.0
    %330 = vmatprep.subr.mxu0 0.0
    %331 = vmatpush1.msra.mxu0 0.0
    %332 = vmatprep.subr.mxu0 0.0
    %333 = vmatpush1.msra.mxu0 0.0
    %334 = vmatprep.subr.mxu0 0.0
    %335 = vmatpush1.msra.mxu0 0.0
    %336 = vmatprep.subr.mxu0 0.0
    %337 = vmatpush1.msra.mxu0 0.0
    %338 = vmatprep.subr.mxu0 0.0
    %339 = vmatpush1.msra.mxu0 0.0
    %340 = vmatprep.subr.mxu0 0.0
    %341 = vmatpush1.msra.mxu0 0.0
    %342 = vmatprep.subr.mxu0 0.0
    %343 = vmatpush1.msra.mxu0 0.0
    %344 = vmatprep.subr.mxu0 0.0
    %345 = vmatpush1.msra.mxu0 0.0
    %346 = vmatprep.subr.mxu0 0.0
    %347 = vmatpush1.msra.mxu0 0.0
    %348 = vmatprep.subr.mxu0 0.0
    %349 = vmatpush1.msra.mxu0 0.0
    %350 = vmatprep.subr.mxu0 0.0
    %351 = vmatpush1.msra.mxu0 0.0
    %352 = vmatprep.subr.mxu0 0.0
    %353 = vmatpush1.msra.mxu0 0.0
    %354 = vmatprep.subr.mxu0 0.0
    %355 = vmatpush1.msra.mxu0 0.0
    %356 = vmatprep.subr.mxu0 0.0
    %357 = vmatpush1.msra.mxu0 0.0
    %358 = vmatprep.subr.mxu0 0.0
    %359 = vmatpush1.msra.mxu0 0.0
    %360 = vmatprep.subr.mxu0 0.0
    %361 = vmatpush1.msra.mxu0 0.0
    %362 = vmatprep.subr.mxu0 0.0
    %363 = vmatpush1.msra.mxu0 0.0
    %364 = vmatprep.subr.mxu0 0.0
    %365 = vmatpush1.msra.mxu0 0.0
    %366 = vmatprep.subr.mxu0 0.0
    %367 = vmatpush1.msra.mxu0 0.0
    %368 = vmatprep.subr.mxu0 0.0
    %369 = vmatpush1.msra.mxu0 0.0
    %370 = vmatprep.mubr.f32.mxu0 0.0
    %371 = vmatmul.mubr.f32.gmra.mrb[0].mxu0 %v304
    %v372 = vpop.f32.mrb[0].mxu0
    %v373 = vadd.f32 0.0, %v372
    %v374 = vpop.f32.mrb[0].mxu0
    %375 = vdwg.mxu0
    %v376 = vadd.f32 %v302, %v373
    %v377 = vtanh.pop %v376
    %s378 = scalar_lea.vmem [#allocation3], 32
    %v379 = vld [vmem:[%s378] sm:$0xff]
    %v381 = vsel %vm71, %v377, 0
    %383 = vmatprep.subr.mxu0 0.0
    %384 = vmatpush1.msra.mxu0 %v65
    %385 = vmatprep.subr.mxu0 0.0
    %386 = vmatpush1.msra.mxu0 %v66
    %387 = vmatprep.subr.mxu0 0.0
    %388 = vmatpush1.msra.mxu0 %v67
    %389 = vmatprep.subr.mxu0 0.0
    %390 = vmatpush1.msra.mxu0 %v68
    %391 = vmatprep.subr.mxu0 0.0
    %392 = vmatpush1.msra.mxu0 0.0
    %393 = vmatprep.subr.mxu0 0.0
    %394 = vmatpush1.msra.mxu0 0.0
    %395 = vmatprep.subr.mxu0 0.0
    %396 = vmatpush1.msra.mxu0 0.0
    %397 = vmatprep.subr.mxu0 0.0
    %398 = vmatpush1.msra.mxu0 0.0
    %399 = vmatprep.subr.mxu0 0.0
    %400 = vmatpush1.msra.mxu0 0.0
    %401 = vmatprep.subr.mxu0 0.0
    %402 = vmatpush1.msra.mxu0 0.0
    %403 = vmatprep.subr.mxu0 0.0
    %404 = vmatpush1.msra.mxu0 0.0
    %405 = vmatprep.subr.mxu0 0.0
    %406 = vmatpush1.msra.mxu0 0.0
    %407 = vmatprep.subr.mxu0 0.0
    %408 = vmatpush1.msra.mxu0 0.0
    %409 = vmatprep.subr.mxu0 0.0
    %410 = vmatpush1.msra.mxu0 0.0
    %411 = vmatprep.subr.mxu0 0.0
    %412 = vmatpush1.msra.mxu0 0.0
    %413 = vmatprep.subr.mxu0 0.0
    %414 = vmatpush1.msra.mxu0 0.0
    %415 = vmatprep.subr.mxu0 0.0
    %416 = vmatpush1.msra.mxu0 0.0
    %417 = vmatprep.subr.mxu0 0.0
    %418 = vmatpush1.msra.mxu0 0.0
    %419 = vmatprep.subr.mxu0 0.0
    %420 = vmatpush1.msra.mxu0 0.0
    %421 = vmatprep.subr.mxu0 0.0
    %422 = vmatpush1.msra.mxu0 0.0
    %423 = vmatprep.subr.mxu0 0.0
    %424 = vmatpush1.msra.mxu0 0.0
    %425 = vmatprep.subr.mxu0 0.0
    %426 = vmatpush1.msra.mxu0 0.0
    %427 = vmatprep.subr.mxu0 0.0
    %428 = vmatpush1.msra.mxu0 0.0
    %429 = vmatprep.subr.mxu0 0.0
    %430 = vmatpush1.msra.mxu0 0.0
    %431 = vmatprep.subr.mxu0 0.0
    %432 = vmatpush1.msra.mxu0 0.0
    %433 = vmatprep.subr.mxu0 0.0
    %434 = vmatpush1.msra.mxu0 0.0
    %435 = vmatprep.subr.mxu0 0.0
    %436 = vmatpush1.msra.mxu0 0.0
    %437 = vmatprep.subr.mxu0 0.0
    %438 = vmatpush1.msra.mxu0 0.0
    %439 = vmatprep.subr.mxu0 0.0
    %440 = vmatpush1.msra.mxu0 0.0
    %441 = vmatprep.subr.mxu0 0.0
    %442 = vmatpush1.msra.mxu0 0.0
    %443 = vmatprep.subr.mxu0 0.0
    %444 = vmatpush1.msra.mxu0 0.0
    %445 = vmatprep.subr.mxu0 0.0
    %446 = vmatpush1.msra.mxu0 0.0
    %447 = vmatprep.mubr.f32.mxu0 0.0
    %448 = vmatmul.mubr.f32.gmra.mrb[0].mxu0 %v381
    %v449 = vpop.f32.mrb[0].mxu0
    %v450 = vadd.f32 0.0, %v449
    %v451 = vpop.f32.mrb[0].mxu0
    %452 = vdwg.mxu0
    %v453 = vadd.f32 %v379, %v450
    %v454 = vtanh.pop %v453
    %s455 = scalar_lea.vmem [#allocation3], 40
    %v456 = vld [vmem:[%s455] sm:$0xff]
    %v458 = vsel %vm71, %v454, 0
    %460 = vmatprep.subr.mxu0 0.0
    %461 = vmatpush1.msra.mxu0 %v65
    %462 = vmatprep.subr.mxu0 0.0
    %463 = vmatpush1.msra.mxu0 %v66
    %464 = vmatprep.subr.mxu0 0.0
    %465 = vmatpush1.msra.mxu0 %v67
    %466 = vmatprep.subr.mxu0 0.0
    %467 = vmatpush1.msra.mxu0 %v68
    %468 = vmatprep.subr.mxu0 0.0
    %469 = vmatpush1.msra.mxu0 0.0
    %470 = vmatprep.subr.mxu0 0.0
    %471 = vmatpush1.msra.mxu0 0.0
    %472 = vmatprep.subr.mxu0 0.0
    %473 = vmatpush1.msra.mxu0 0.0
    %474 = vmatprep.subr.mxu0 0.0
    %475 = vmatpush1.msra.mxu0 0.0
    %476 = vmatprep.subr.mxu0 0.0
    %477 = vmatpush1.msra.mxu0 0.0
    %478 = vmatprep.subr.mxu0 0.0
    %479 = vmatpush1.msra.mxu0 0.0
    %480 = vmatprep.subr.mxu0 0.0
    %481 = vmatpush1.msra.mxu0 0.0
    %482 = vmatprep.subr.mxu0 0.0
    %483 = vmatpush1.msra.mxu0 0.0
    %484 = vmatprep.subr.mxu0 0.0
    %485 = vmatpush1.msra.mxu0 0.0
    %486 = vmatprep.subr.mxu0 0.0
    %487 = vmatpush1.msra.mxu0 0.0
    %488 = vmatprep.subr.mxu0 0.0
    %489 = vmatpush1.msra.mxu0 0.0
    %490 = vmatprep.subr.mxu0 0.0
    %491 = vmatpush1.msra.mxu0 0.0
    %492 = vmatprep.subr.mxu0 0.0
    %493 = vmatpush1.msra.mxu0 0.0
    %494 = vmatprep.subr.mxu0 0.0
    %495 = vmatpush1.msra.mxu0 0.0
    %496 = vmatprep.subr.mxu0 0.0
    %497 = vmatpush1.msra.mxu0 0.0
    %498 = vmatprep.subr.mxu0 0.0
    %499 = vmatpush1.msra.mxu0 0.0
    %500 = vmatprep.subr.mxu0 0.0
    %501 = vmatpush1.msra.mxu0 0.0
    %502 = vmatprep.subr.mxu0 0.0
    %503 = vmatpush1.msra.mxu0 0.0
    %504 = vmatprep.subr.mxu0 0.0
    %505 = vmatpush1.msra.mxu0 0.0
    %506 = vmatprep.subr.mxu0 0.0
    %507 = vmatpush1.msra.mxu0 0.0
    %508 = vmatprep.subr.mxu0 0.0
    %509 = vmatpush1.msra.mxu0 0.0
    %510 = vmatprep.subr.mxu0 0.0
    %511 = vmatpush1.msra.mxu0 0.0
    %512 = vmatprep.subr.mxu0 0.0
    %513 = vmatpush1.msra.mxu0 0.0
    %514 = vmatprep.subr.mxu0 0.0
    %515 = vmatpush1.msra.mxu0 0.0
    %516 = vmatprep.subr.mxu0 0.0
    %517 = vmatpush1.msra.mxu0 0.0
    %518 = vmatprep.subr.mxu0 0.0
    %519 = vmatpush1.msra.mxu0 0.0
    %520 = vmatprep.subr.mxu0 0.0
    %521 = vmatpush1.msra.mxu0 0.0
    %522 = vmatprep.subr.mxu0 0.0
    %523 = vmatpush1.msra.mxu0 0.0
    %524 = vmatprep.mubr.f32.mxu0 0.0
    %525 = vmatmul.mubr.f32.gmra.mrb[0].mxu0 %v458
    %v526 = vpop.f32.mrb[0].mxu0
    %v527 = vadd.f32 0.0, %v526
    %v528 = vpop.f32.mrb[0].mxu0
    %529 = vdwg.mxu0
    %v530 = vadd.f32 %v456, %v527
    %v531 = vtanh.pop %v530
    %s532 = scalar_lea.vmem [#allocation3], 48
    %v533 = vld [vmem:[%s532] sm:$0xff]
    %v535 = vsel %vm71, %v531, 0
    %537 = vmatprep.subr.mxu0 0.0
    %538 = vmatpush1.msra.mxu0 %v65
    %539 = vmatprep.subr.mxu0 0.0
    %540 = vmatpush1.msra.mxu0 %v66
    %541 = vmatprep.subr.mxu0 0.0
    %542 = vmatpush1.msra.mxu0 %v67
    %543 = vmatprep.subr.mxu0 0.0
    %544 = vmatpush1.msra.mxu0 %v68
    %545 = vmatprep.subr.mxu0 0.0
    %546 = vmatpush1.msra.mxu0 0.0
    %547 = vmatprep.subr.mxu0 0.0
    %548 = vmatpush1.msra.mxu0 0.0
    %549 = vmatprep.subr.mxu0 0.0
    %550 = vmatpush1.msra.mxu0 0.0
    %551 = vmatprep.subr.mxu0 0.0
    %552 = vmatpush1.msra.mxu0 0.0
    %553 = vmatprep.subr.mxu0 0.0
    %554 = vmatpush1.msra.mxu0 0.0
    %555 = vmatprep.subr.mxu0 0.0
    %556 = vmatpush1.msra.mxu0 0.0
    %557 = vmatprep.subr.mxu0 0.0
    %558 = vmatpush1.msra.mxu0 0.0
    %559 = vmatprep.subr.mxu0 0.0
    %560 = vmatpush1.msra.mxu0 0.0
    %561 = vmatprep.subr.mxu0 0.0
    %562 = vmatpush1.msra.mxu0 0.0
    %563 = vmatprep.subr.mxu0 0.0
    %564 = vmatpush1.msra.mxu0 0.0
    %565 = vmatprep.subr.mxu0 0.0
    %566 = vmatpush1.msra.mxu0 0.0
    %567 = vmatprep.subr.mxu0 0.0
    %568 = vmatpush1.msra.mxu0 0.0
    %569 = vmatprep.subr.mxu0 0.0
    %570 = vmatpush1.msra.mxu0 0.0
    %571 = vmatprep.subr.mxu0 0.0
    %572 = vmatpush1.msra.mxu0 0.0
    %573 = vmatprep.subr.mxu0 0.0
    %574 = vmatpush1.msra.mxu0 0.0
    %575 = vmatprep.subr.mxu0 0.0
    %576 = vmatpush1.msra.mxu0 0.0
    %577 = vmatprep.subr.mxu0 0.0
    %578 = vmatpush1.msra.mxu0 0.0
    %579 = vmatprep.subr.mxu0 0.0
    %580 = vmatpush1.msra.mxu0 0.0
    %581 = vmatprep.subr.mxu0 0.0
    %582 = vmatpush1.msra.mxu0 0.0
    %583 = vmatprep.subr.mxu0 0.0
    %584 = vmatpush1.msra.mxu0 0.0
    %585 = vmatprep.subr.mxu0 0.0
    %586 = vmatpush1.msra.mxu0 0.0
    %587 = vmatprep.subr.mxu0 0.0
    %588 = vmatpush1.msra.mxu0 0.0
    %589 = vmatprep.subr.mxu0 0.0
    %590 = vmatpush1.msra.mxu0 0.0
    %591 = vmatprep.subr.mxu0 0.0
    %592 = vmatpush1.msra.mxu0 0.0
    %593 = vmatprep.subr.mxu0 0.0
    %594 = vmatpush1.msra.mxu0 0.0
    %595 = vmatprep.subr.mxu0 0.0
    %596 = vmatpush1.msra.mxu0 0.0
    %597 = vmatprep.subr.mxu0 0.0
    %598 = vmatpush1.msra.mxu0 0.0
    %599 = vmatprep.subr.mxu0 0.0
    %600 = vmatpush1.msra.mxu0 0.0
    %601 = vmatprep.mubr.f32.mxu0 0.0
    %602 = vmatmul.mubr.f32.gmra.mrb[0].mxu0 %v535
    %v603 = vpop.f32.mrb[0].mxu0
    %v604 = vadd.f32 0.0, %v603
    %v605 = vpop.f32.mrb[0].mxu0
    %606 = vdwg.mxu0
    %v607 = vadd.f32 %v533, %v604
    %v608 = vtanh.pop %v607
    %s609 = scalar_lea.vmem [#allocation3], 56
    %v610 = vld [vmem:[%s609] sm:$0xff]
    %v612 = vsel %vm71, %v608, 0
    %614 = vmatprep.subr.mxu0 0.0
    %615 = vmatpush1.msra.mxu0 %v65
    %616 = vmatprep.subr.mxu0 0.0
    %617 = vmatpush1.msra.mxu0 %v66
    %618 = vmatprep.subr.mxu0 0.0
    %619 = vmatpush1.msra.mxu0 %v67
    %620 = vmatprep.subr.mxu0 0.0
    %621 = vmatpush1.msra.mxu0 %v68
    %622 = vmatprep.subr.mxu0 0.0
    %623 = vmatpush1.msra.mxu0 0.0
    %624 = vmatprep.subr.mxu0 0.0
    %625 = vmatpush1.msra.mxu0 0.0
    %626 = vmatprep.subr.mxu0 0.0
    %627 = vmatpush1.msra.mxu0 0.0
    %628 = vmatprep.subr.mxu0 0.0
    %629 = vmatpush1.msra.mxu0 0.0
    %630 = vmatprep.subr.mxu0 0.0
    %631 = vmatpush1.msra.mxu0 0.0
    %632 = vmatprep.subr.mxu0 0.0
    %633 = vmatpush1.msra.mxu0 0.0
    %634 = vmatprep.subr.mxu0 0.0
    %635 = vmatpush1.msra.mxu0 0.0
    %636 = vmatprep.subr.mxu0 0.0
    %637 = vmatpush1.msra.mxu0 0.0
    %638 = vmatprep.subr.mxu0 0.0
    %639 = vmatpush1.msra.mxu0 0.0
    %640 = vmatprep.subr.mxu0 0.0
    %641 = vmatpush1.msra.mxu0 0.0
    %642 = vmatprep.subr.mxu0 0.0
    %643 = vmatpush1.msra.mxu0 0.0
    %644 = vmatprep.subr.mxu0 0.0
    %645 = vmatpush1.msra.mxu0 0.0
    %646 = vmatprep.subr.mxu0 0.0
    %647 = vmatpush1.msra.mxu0 0.0
    %648 = vmatprep.subr.mxu0 0.0
    %649 = vmatpush1.msra.mxu0 0.0
    %650 = vmatprep.subr.mxu0 0.0
    %651 = vmatpush1.msra.mxu0 0.0
    %652 = vmatprep.subr.mxu0 0.0
    %653 = vmatpush1.msra.mxu0 0.0
    %654 = vmatprep.subr.mxu0 0.0
    %655 = vmatpush1.msra.mxu0 0.0
    %656 = vmatprep.subr.mxu0 0.0
    %657 = vmatpush1.msra.mxu0 0.0
    %658 = vmatprep.subr.mxu0 0.0
    %659 = vmatpush1.msra.mxu0 0.0
    %660 = vmatprep.subr.mxu0 0.0
    %661 = vmatpush1.msra.mxu0 0.0
    %662 = vmatprep.subr.mxu0 0.0
    %663 = vmatpush1.msra.mxu0 0.0
    %664 = vmatprep.subr.mxu0 0.0
    %665 = vmatpush1.msra.mxu0 0.0
    %666 = vmatprep.subr.mxu0 0.0
    %667 = vmatpush1.msra.mxu0 0.0
    %668 = vmatprep.subr.mxu0 0.0
    %669 = vmatpush1.msra.mxu0 0.0
    %670 = vmatprep.subr.mxu0 0.0
    %671 = vmatpush1.msra.mxu0 0.0
    %672 = vmatprep.subr.mxu0 0.0
    %673 = vmatpush1.msra.mxu0 0.0
    %674 = vmatprep.subr.mxu0 0.0
    %675 = vmatpush1.msra.mxu0 0.0
    %676 = vmatprep.subr.mxu0 0.0
    %677 = vmatpush1.msra.mxu0 0.0
    %678 = vmatprep.mubr.f32.mxu0 0.0
    %679 = vmatmul.mubr.f32.gmra.mrb[0].mxu0 %v612
    %v680 = vpop.f32.mrb[0].mxu0
    %v681 = vadd.f32 0.0, %v680
    %v682 = vpop.f32.mrb[0].mxu0
    %683 = vdwg.mxu0
    %v684 = vadd.f32 %v610, %v681
    %v685 = vtanh.pop %v684
    %686 = vst.msk [vmem:[#allocation2] sm:$0xff] %vm71, %v685
    // Predicated region
    $region34: #{tpu_custom_call.1} parent=1 // pred_check
      %p687 = pneg %p59
    $region35: #{tpu_custom_call.1} parent=1 // pred_check_branch
      %689 = sbr.rel (%p687) target = $region37
    $region36: #{tpu_custom_call.1} parent=1 // pred_region
      %v690 = vld [vmem:[#allocation2] sm:$0xff]
      %v691 = vld [vmem:[#allocation8] sm:$0xff]
      %v692 = vld [vmem:[#allocation8 + $0x8] sm:$0xff]
      %v693 = vld [vmem:[#allocation8 + $0x10] sm:$0xff]
      %v694 = vld [vmem:[#allocation8 + $0x18] sm:$0xff]
      %v695 = vld [vmem:[%s3] sm:$0x1]
      %v697 = vlaneseq
      %v698 = vshrl.u32 %v697, 7
      %v699 = vsub.s32 0, %v698
      %v700 = vrot.slane %v695, %v699
      %v703 = vsel %vm71, %v690, 0
      %705 = vmatprep.subr.mxu0 0.0
      %706 = vmatpush1.msra.mxu0 %v691
      %707 = vmatprep.subr.mxu0 0.0
      %708 = vmatpush1.msra.mxu0 %v692
      %709 = vmatprep.subr.mxu0 0.0
      %710 = vmatpush1.msra.mxu0 %v693
      %711 = vmatprep.subr.mxu0 0.0
      %712 = vmatpush1.msra.mxu0 %v694
      %713 = vmatprep.subr.mxu0 0.0
      %714 = vmatpush1.msra.mxu0 0.0
      %715 = vmatprep.subr.mxu0 0.0
      %716 = vmatpush1.msra.mxu0 0.0
      %717 = vmatprep.subr.mxu0 0.0
      %718 = vmatpush1.msra.mxu0 0.0
      %719 = vmatprep.subr.mxu0 0.0
      %720 = vmatpush1.msra.mxu0 0.0
      %721 = vmatprep.subr.mxu0 0.0
      %722 = vmatpush1.msra.mxu0 0.0
      %723 = vmatprep.subr.mxu0 0.0
      %724 = vmatpush1.msra.mxu0 0.0
      %725 = vmatprep.subr.mxu0 0.0
      %726 = vmatpush1.msra.mxu0 0.0
      %727 = vmatprep.subr.mxu0 0.0
      %728 = vmatpush1.msra.mxu0 0.0
      %729 = vmatprep.subr.mxu0 0.0
      %730 = vmatpush1.msra.mxu0 0.0
      %731 = vmatprep.subr.mxu0 0.0
      %732 = vmatpush1.msra.mxu0 0.0
      %733 = vmatprep.subr.mxu0 0.0
      %734 = vmatpush1.msra.mxu0 0.0
      %735 = vmatprep.subr.mxu0 0.0
      %736 = vmatpush1.msra.mxu0 0.0
      %737 = vmatprep.subr.mxu0 0.0
      %738 = vmatpush1.msra.mxu0 0.0
      %739 = vmatprep.subr.mxu0 0.0
      %740 = vmatpush1.msra.mxu0 0.0
      %741 = vmatprep.subr.mxu0 0.0
      %742 = vmatpush1.msra.mxu0 0.0
      %743 = vmatprep.subr.mxu0 0.0
      %744 = vmatpush1.msra.mxu0 0.0
      %745 = vmatprep.subr.mxu0 0.0
      %746 = vmatpush1.msra.mxu0 0.0
      %747 = vmatprep.subr.mxu0 0.0
      %748 = vmatpush1.msra.mxu0 0.0
      %749 = vmatprep.subr.mxu0 0.0
      %750 = vmatpush1.msra.mxu0 0.0
      %751 = vmatprep.subr.mxu0 0.0
      %752 = vmatpush1.msra.mxu0 0.0
      %753 = vmatprep.subr.mxu0 0.0
      %754 = vmatpush1.msra.mxu0 0.0
      %755 = vmatprep.subr.mxu0 0.0
      %756 = vmatpush1.msra.mxu0 0.0
      %757 = vmatprep.subr.mxu0 0.0
      %758 = vmatpush1.msra.mxu0 0.0
      %759 = vmatprep.subr.mxu0 0.0
      %760 = vmatpush1.msra.mxu0 0.0
      %761 = vmatprep.subr.mxu0 0.0
      %762 = vmatpush1.msra.mxu0 0.0
      %763 = vmatprep.subr.mxu0 0.0
      %764 = vmatpush1.msra.mxu0 0.0
      %765 = vmatprep.subr.mxu0 0.0
      %766 = vmatpush1.msra.mxu0 0.0
      %767 = vmatprep.subr.mxu0 0.0
      %768 = vmatpush1.msra.mxu0 0.0
      %769 = vmatprep.mubr.f32.mxu0 0.0
      %770 = vmatmul.mubr.f32.gmra.mrb[0].mxu0 %v703
      %v771 = vpop.f32.mrb[0].mxu0
      %v772 = vadd.f32 %v700, %v771
      %v773 = vpop.f32.mrb[0].mxu0
      %774 = vdwg.mxu0
      %775 = vmax.xlane.f32.xlu0 %v772
      %v776 = vpop.xlane.xlu0 %775
      %v777 = vsub.f32 %v772, %v776
      %v778 = vmul.f32 %v777, 1.442695
      %v779 = vpow.pop %v778
      %780 = vadd.xlane.f32.xlu0 %v779
      %v781 = vpop.xlane.xlu0 %780
      %v782 = vrcp.pop %v781
      %v783 = vmul.f32 %v779, %v782
      %784 = vst [vmem:[#allocation9] sm:$0xff] %v783
    $region37: #{tpu_custom_call.1} parent=1 // pred_fallthru
      _
    // Predicated region
    $region38: #{tpu_custom_call.1} parent=1 // pred_check
      _
    $region39: #{tpu_custom_call.1} parent=1 // pred_check_branch
      %786 = sbr.rel (0) target = $region41
    $region40: #{tpu_custom_call.1} parent=1 // pred_region
      %s788 = ssub.s32 128, 128
      %789 = vsyncadd [#allocation5], %s788
      %s791 = sshll.u32 [#allocation9], 4
      %s792 = int_to_ptr.vmem [resolvable:$true] %s791
      %794 = dma.vmem_to_hbm [thread:$0]  %s792, 128, %s4, [#allocation5]
    $region41: #{tpu_custom_call.1} parent=1 // pred_fallthru
      _
    // Predicated region
    $region42: #{tpu_custom_call.1} parent=1 // pred_check
      _
    $region43: #{tpu_custom_call.1} parent=1 // pred_check_branch
      %796 = sbr.rel (0) target = $region45
    $region44: #{tpu_custom_call.1} parent=1 // pred_region
      %797 = dma.done [#allocation5], 128
    $region45: #{tpu_custom_call.1} parent=1 // pred_fallthru
      _
    %798 = vsyncpa [#allocation4], 1
    %799 = vsyncpa [#allocation7], 1
    %800 = vsyncpa [#allocation5], 1

</llo_original>
